<compile_context>
chip_gen: v7x
topology: tpu7x:2x2x1
jax: 0.10.0
libtpu: 0.0.40
codegen_flags: <defaults>
</compile_context>

<pallas_src>
import functools
import math

import jax
import jax.numpy as jnp
import numpy as np
from jax import lax
from jax.experimental import pallas as pl
from jax.experimental.pallas import tpu as pltpu

INPUT_SIZE = 8
HIDDEN_SIZE = 32
OUTPUT_SIZE = 4
E_PROP = 0.8
E_SIZE = int(E_PROP * HIDDEN_SIZE)        # 25 excitatory units
# RNN.__init__ hard-codes `alpha = 1` regardless of the ctor argument, so the
# module's recurrence effectively uses alpha == 1.0 (specialized below).
ALPHA = 1.0
SIGMA_REC = 0.0                           # module default -> noise term is exactly 0


def _eirnn_kernel(tt, tb, x_ref, w_ih_ref, w_hh_ref, b_in_ref, w_fc_ref,
                  b_fc_ref, out_ref, act_ref, outp_sc, xproj_sc):
    """One time-chunk of the EIRNN forward.

    tt: timesteps per chunk (static), tb: batch rows (static).
    All VMEM blocks are flat 2-D (tt*tb, feature)."""
    c = pl.program_id(0)                  # time-chunk index (sequential axis)

    @pl.when(c == 0)
    def _():
        outp_sc[...] = jnp.zeros_like(outp_sc)

    # ---- Stage 1: input2h projection, ONE matmul for the whole chunk --------
    # (tt*tb, I) @ (I, H); bias b_ih + b_hh pre-summed in the wrapper.
    xproj_sc[...] = (
        jnp.dot(x_ref[...], w_ih_ref[...], preferred_element_type=jnp.float32)
        + b_in_ref[...])

    # ---- Stage 2: serial recurrence (alpha == 1 specialization) -------------
    w_hh = w_hh_ref[...]                  # effective E-I weight, transposed

    def rec_step(s, output):
        off = pl.multiple_of(s * tb, tb)
        total = xproj_sc[pl.ds(off, tb), :] + jnp.dot(
            output, w_hh, preferred_element_type=jnp.float32)
        # TODO(synk): sigma_rec * randn_like(state) noise omitted — sigma_rec=0
        # (module default), so the additive term is exactly zero.
        output = jnp.tanh(total)
        act_ref[pl.ds(off, tb), :] = output
        return output

    unroll = True if tt <= 64 else 8
    output = lax.fori_loop(0, tt, rec_step, outp_sc[...], unroll=unroll)
    outp_sc[...] = output                 # carry to the next chunk

    # ---- Stage 3: fc readout, ONE matmul + ONE slab store per chunk ---------
    # Zero-padded weight rows stand in for the [:, :e_size] excitatory slice.
    out_ref[...] = (
        jnp.dot(act_ref[...], w_fc_ref[...], preferred_element_type=jnp.float32)
        + b_fc_ref[...])


def _choose_chunk(T, B, chunk):
    """Pick TT (timesteps per chunk) and padded length Tp."""
    TT = min(chunk, T)
    if TT == T:
        return T, T
    # Multiple chunks: flattened blocks need (TT*B) % 8 == 0 (sublane alignment).
    # Prefer a divisor of T so x never has to be padded/copied in HBM.
    for d in range(TT, 0, -1):
        if T % d == 0 and (d * B) % 8 == 0:
            if 2 * d >= TT:               # divisor not degenerately small
                return d, T
            break
    # Fall back to padding the time axis.
    while (TT * B) % 8 != 0:
        TT += 1
    Tp = -(-T // TT) * TT
    return TT, Tp


def eirnn_forward(x, w_ih_t, w_hh_t, b_in, w_fc_pad, b_fc, *, chunk=256):
    """Pallas EIRNN forward. Returns (out (T,B,O), rnn_activity (T,B,H))."""
    T, B, I = x.shape
    H = w_hh_t.shape[0]
    O = w_fc_pad.shape[1]

    TT, Tp = _choose_chunk(T, B, chunk)
    nc = Tp // TT
    if Tp != T:
        x = jnp.concatenate([x, jnp.zeros((Tp - T, B, I), x.dtype)], axis=0)

    # Flatten time-major (Tp, B, I) -> (Tp*B, I): contiguous, free reshape.
    x2 = x.reshape(Tp * B, I)

    grid_spec = pltpu.PrefetchScalarGridSpec(
        num_scalar_prefetch=0,
        grid=(nc,),
        in_specs=[
            pl.BlockSpec((TT * B, I), lambda c: (c, 0)),   # x chunk (flat)
            pl.BlockSpec((I, H), lambda c: (0, 0)),        # input2h (W.T)
            pl.BlockSpec((H, H), lambda c: (0, 0)),        # h2h eff (W.T)
            pl.BlockSpec((1, H), lambda c: (0, 0)),        # b_ih + b_hh
            pl.BlockSpec((H, O), lambda c: (0, 0)),        # fc (padded W.T)
            pl.BlockSpec((1, O), lambda c: (0, 0)),        # fc bias
        ],
        out_specs=[
            pl.BlockSpec((TT * B, O), lambda c: (c, 0)),   # out (flat, streamed)
            pl.BlockSpec((TT * B, H), lambda c: (c, 0)),   # activity (flat)
        ],
        scratch_shapes=[
            pltpu.VMEM((B, H), jnp.float32),        # output carry (tanh state)
            pltpu.VMEM((TT * B, H), jnp.float32),   # hoisted input projection
        ],
    )

    out2, act2 = pl.pallas_call(
        functools.partial(_eirnn_kernel, TT, B),
        out_shape=(jax.ShapeDtypeStruct((Tp * B, O), jnp.float32),
                   jax.ShapeDtypeStruct((Tp * B, H), jnp.float32)),
        grid_spec=grid_spec,
        compiler_params=pltpu.CompilerParams(
            dimension_semantics=("arbitrary",)),
    )(x2, w_ih_t, w_hh_t, b_in, w_fc_pad, b_fc)

    out = out2.reshape(Tp, B, O)[:T]
    act = act2.reshape(Tp, B, H)[:T]
    return out, act


# --------------------------- parameters / reference ---------------------------

def init_params(key):
    """Raw parameters mirroring the PyTorch module's layers (fan-in uniform)."""
    H, I, O, E = HIDDEN_SIZE, INPUT_SIZE, OUTPUT_SIZE, E_SIZE
    ks = jax.random.split(key, 6)

    def unif(k, shape, fan_in):
        b = 1.0 / math.sqrt(fan_in)
        return jax.random.uniform(k, shape, jnp.float32, -b, b)

    w_ih = unif(ks[0], (H, I), I)          # input2h.weight
    b_ih = unif(ks[1], (H,), I)            # input2h.bias
    w_hh = unif(ks[2], (H, H), H)          # h2h.weight (raw)
    w_hh = w_hh.at[:, :E].multiply((H - E) / E)   # EIRecLinear.reset_parameters
    b_hh = unif(ks[3], (H,), H)            # h2h.bias
    w_fc = unif(ks[4], (O, E), E)          # fc.weight (output_size, e_size)
    b_fc = unif(ks[5], (O,), E)            # fc.bias

    # EIRecLinear effective weight: |W| * mask (Dale's law), diagonal zeroed.
    mask = np.tile([1.0] * E + [-1.0] * (H - E), (H, 1)).astype(np.float32)
    np.fill_diagonal(mask, 0.0)
    w_hh_eff = jnp.abs(w_hh) * jnp.asarray(mask)

    return w_ih, b_ih, w_hh_eff, b_hh, w_fc, b_fc


def prepare_params(w_ih, b_ih, w_hh_eff, b_hh, w_fc, b_fc):
    """Pre-transpose / fuse parameters for the kernel (alpha=1 specialized)."""
    H, O, E = HIDDEN_SIZE, OUTPUT_SIZE, E_SIZE
    w_ih_t = w_ih.T                                   # (I, H)
    w_hh_t = w_hh_eff.T                               # (H, H)
    b_in = (b_ih + b_hh).reshape(1, H)                # fused bias
    w_fc_pad = jnp.zeros((H, O), jnp.float32).at[:E].set(w_fc.T)  # pad inhibitory rows
    b_fc2 = b_fc.reshape(1, O)
    return w_ih_t, w_hh_t, b_in, w_fc_pad, b_fc2


def reference_forward(x, w_ih, b_ih, w_hh_eff, b_hh, w_fc, b_fc, alpha):
    """Pure-JAX mirror of EIRNN.forward (module-style math, unfused params)."""
    T, B, _ = x.shape
    H, E = HIDDEN_SIZE, E_SIZE
    state = jnp.zeros((B, H), jnp.float32)
    output = jnp.zeros((B, H), jnp.float32)
    acts = []
    for t in range(T):
        total = x[t] @ w_ih.T + b_ih + output @ w_hh_eff.T + b_hh
        state = alpha * (total - state) + state
        output = jnp.tanh(state)
        acts.append(output)
    act = jnp.stack(acts, 0)                          # (T, B, H)
    out = act[:, :, :E] @ w_fc.T + b_fc               # (T, B, O)
    return out, act


if __name__ == "__main__":
    key = jax.random.PRNGKey(0)
    k_param, k_x = jax.random.split(key)

    T, B = 8, 2
    x = jax.random.normal(k_x, (T, B, INPUT_SIZE), jnp.float32)

    raw_params = init_params(k_param)
    kernel_params = prepare_params(*raw_params)

    out, act = eirnn_forward(x, *kernel_params)
    jax.block_until_ready((out, act))

    out_exp, act_exp = reference_forward(x, *raw_params, ALPHA)
    assert out.shape == (T, B, OUTPUT_SIZE)
    assert act.shape == (T, B, HIDDEN_SIZE)
    np.testing.assert_allclose(np.asarray(out), np.asarray(out_exp),
                               rtol=1e-5, atol=1e-5)
    np.testing.assert_allclose(np.asarray(act), np.asarray(act_exp),
                               rtol=1e-5, atol=1e-5)
    print("KERNEL_OK")
</pallas_src>

<mosaic_0001>
module attributes {stable_mosaic.version = 11 : i64} {
  func.func @_eirnn_kernel(%arg0: i32, %arg1: memref<16x8xf32, #tpu.memory_space<vmem>>, %arg2: memref<8x32xf32, #tpu.memory_space<vmem>>, %arg3: memref<32x32xf32, #tpu.memory_space<vmem>>, %arg4: memref<1x32xf32, #tpu.memory_space<vmem>>, %arg5: memref<32x4xf32, #tpu.memory_space<vmem>>, %arg6: memref<1x4xf32, #tpu.memory_space<vmem>>, %arg7: memref<16x4xf32, #tpu.memory_space<vmem>>, %arg8: memref<16x32xf32, #tpu.memory_space<vmem>>, %arg9: memref<2x32xf32, #tpu.memory_space<vmem>>, %arg10: memref<16x32xf32, #tpu.memory_space<vmem>>) attributes {dimension_semantics = [#tpu.dimension_semantics<arbitrary>], iteration_bounds = array<i64: 1>, scalar_prefetch = 0 : i64, scratch_operands = 2 : i64, tpu.core_type = #tpu.core_type<tc>, window_params = [{transform_indices = @transform_0, window_bounds = array<i64: 16, 8>}, {pipeline_mode = #tpu.pipeline_mode<synchronous>, transform_indices = @transform_1, window_bounds = array<i64: 8, 32>}, {pipeline_mode = #tpu.pipeline_mode<synchronous>, transform_indices = @transform_2, window_bounds = array<i64: 32, 32>}, {pipeline_mode = #tpu.pipeline_mode<synchronous>, transform_indices = @transform_3, window_bounds = array<i64: 1, 32>}, {pipeline_mode = #tpu.pipeline_mode<synchronous>, transform_indices = @transform_4, window_bounds = array<i64: 32, 4>}, {pipeline_mode = #tpu.pipeline_mode<synchronous>, transform_indices = @transform_5, window_bounds = array<i64: 1, 4>}, {transform_indices = @transform_6, window_bounds = array<i64: 16, 4>}, {transform_indices = @transform_7, window_bounds = array<i64: 16, 32>}]} {
    %c0_i32 = arith.constant 0 : i32
    %0 = arith.cmpi eq, %arg0, %c0_i32 : i32
    %1 = arith.extui %0 : i1 to i32
    %c0_i32_0 = arith.constant 0 : i32
    %2 = arith.cmpi ne, %1, %c0_i32_0 : i32
    scf.if %2 {
      %cst_56 = arith.constant 0.000000e+00 : f32
      %92 = vector.broadcast %cst_56 : f32 to vector<2x32xf32>
      %c0_57 = arith.constant 0 : index
      %c0_58 = arith.constant 0 : index
      %93 = vector.load %arg9[%c0_57, %c0_58] : memref<2x32xf32, #tpu.memory_space<vmem>>, vector<2x32xf32>
      tpu.vector_store %arg9[%c0_57, %c0_58], %92 {strides = array<i32>} : memref<2x32xf32, #tpu.memory_space<vmem>>, vector<2x32xf32>,
    } else {
    }
    %c0 = arith.constant 0 : index
    %c0_1 = arith.constant 0 : index
    %3 = vector.load %arg1[%c0, %c0_1] : memref<16x8xf32, #tpu.memory_space<vmem>>, vector<16x8xf32>
    %c0_2 = arith.constant 0 : index
    %c0_3 = arith.constant 0 : index
    %4 = vector.load %arg2[%c0_2, %c0_3] : memref<8x32xf32, #tpu.memory_space<vmem>>, vector<8x32xf32>
    %cst = arith.constant dense<0.000000e+00> : vector<16x32xf32>
    %5 = tpu.matmul %3, %4, %cst {dimension_numbers = #tpu.dot_dimension_numbers<[1], [0], [0], [1], [0, 0, 1, 1], [], []>} : vector<16x8xf32>, vector<8x32xf32>, vector<16x32xf32> -> vector<16x32xf32>
    %c0_4 = arith.constant 0 : index
    %c0_5 = arith.constant 0 : index
    %6 = vector.load %arg4[%c0_4, %c0_5] : memref<1x32xf32, #tpu.memory_space<vmem>>, vector<1x32xf32>
    %7 = vector.broadcast %6 : vector<1x32xf32> to vector<16x32xf32>
    %8 = arith.addf %5, %7 : vector<16x32xf32>
    %c0_6 = arith.constant 0 : index
    %c0_7 = arith.constant 0 : index
    %9 = vector.load %arg10[%c0_6, %c0_7] : memref<16x32xf32, #tpu.memory_space<vmem>>, vector<16x32xf32>
    tpu.vector_store %arg10[%c0_6, %c0_7], %8 {strides = array<i32>} : memref<16x32xf32, #tpu.memory_space<vmem>>, vector<16x32xf32>,
    %c0_8 = arith.constant 0 : index
    %c0_9 = arith.constant 0 : index
    %10 = vector.load %arg3[%c0_8, %c0_9] : memref<32x32xf32, #tpu.memory_space<vmem>>, vector<32x32xf32>
    %c0_10 = arith.constant 0 : index
    %c0_11 = arith.constant 0 : index
    %11 = vector.load %arg9[%c0_10, %c0_11] : memref<2x32xf32, #tpu.memory_space<vmem>>, vector<2x32xf32>
    %c0_i32_12 = arith.constant 0 : i32
    %c2_i32 = arith.constant 2 : i32
    %12 = arith.muli %c0_i32_12, %c2_i32 : i32
    %13 = tpu.assume_multiple %12, 2 : i32
    %14 = arith.index_cast %13 : i32 to index
    %c0_13 = arith.constant 0 : index
    %15 = vector.load %arg10[%14, %c0_13] : memref<16x32xf32, #tpu.memory_space<vmem>>, vector<2x32xf32>
    %cst_14 = arith.constant dense<0.000000e+00> : vector<2x32xf32>
    %16 = tpu.matmul %11, %10, %cst_14 {dimension_numbers = #tpu.dot_dimension_numbers<[1], [0], [0], [1], [0, 0, 1, 1], [], []>} : vector<2x32xf32>, vector<32x32xf32>, vector<2x32xf32> -> vector<2x32xf32>
    %17 = arith.addf %15, %16 : vector<2x32xf32>
    %18 = math.tanh %17 : vector<2x32xf32>
    %19 = arith.index_cast %13 : i32 to index
    %c0_15 = arith.constant 0 : index
    %20 = vector.load %arg8[%19, %c0_15] : memref<16x32xf32, #tpu.memory_space<vmem>>, vector<2x32xf32>
    tpu.vector_store %arg8[%19, %c0_15], %18 {strides = array<i32>} : memref<16x32xf32, #tpu.memory_space<vmem>>, vector<2x32xf32>,
    %c1_i32 = arith.constant 1 : i32
    %c2_i32_16 = arith.constant 2 : i32
    %21 = arith.muli %c1_i32, %c2_i32_16 : i32
    %22 = tpu.assume_multiple %21, 2 : i32
    %23 = arith.index_cast %22 : i32 to index
    %c0_17 = arith.constant 0 : index
    %24 = vector.load %arg10[%23, %c0_17] : memref<16x32xf32, #tpu.memory_space<vmem>>, vector<2x32xf32>
    %cst_18 = arith.constant dense<0.000000e+00> : vector<2x32xf32>
    %25 = tpu.matmul %18, %10, %cst_18 {dimension_numbers = #tpu.dot_dimension_numbers<[1], [0], [0], [1], [0, 0, 1, 1], [], []>} : vector<2x32xf32>, vector<32x32xf32>, vector<2x32xf32> -> vector<2x32xf32>
    %26 = arith.addf %24, %25 : vector<2x32xf32>
    %27 = math.tanh %26 : vector<2x32xf32>
    %28 = arith.index_cast %22 : i32 to index
    %c0_19 = arith.constant 0 : index
    %29 = vector.load %arg8[%28, %c0_19] : memref<16x32xf32, #tpu.memory_space<vmem>>, vector<2x32xf32>
    tpu.vector_store %arg8[%28, %c0_19], %27 {strides = array<i32>} : memref<16x32xf32, #tpu.memory_space<vmem>>, vector<2x32xf32>,
    %c2_i32_20 = arith.constant 2 : i32
    %c2_i32_21 = arith.constant 2 : i32
    %30 = arith.muli %c2_i32_20, %c2_i32_21 : i32
    %31 = tpu.assume_multiple %30, 2 : i32
    %32 = arith.index_cast %31 : i32 to index
    %c0_22 = arith.constant 0 : index
    %33 = vector.load %arg10[%32, %c0_22] : memref<16x32xf32, #tpu.memory_space<vmem>>, vector<2x32xf32>
    %cst_23 = arith.constant dense<0.000000e+00> : vector<2x32xf32>
    %34 = tpu.matmul %27, %10, %cst_23 {dimension_numbers = #tpu.dot_dimension_numbers<[1], [0], [0], [1], [0, 0, 1, 1], [], []>} : vector<2x32xf32>, vector<32x32xf32>, vector<2x32xf32> -> vector<2x32xf32>
    %35 = arith.addf %33, %34 : vector<2x32xf32>
    %36 = math.tanh %35 : vector<2x32xf32>
    %37 = arith.index_cast %31 : i32 to index
    %c0_24 = arith.constant 0 : index
    %38 = vector.load %arg8[%37, %c0_24] : memref<16x32xf32, #tpu.memory_space<vmem>>, vector<2x32xf32>
    tpu.vector_store %arg8[%37, %c0_24], %36 {strides = array<i32>} : memref<16x32xf32, #tpu.memory_space<vmem>>, vector<2x32xf32>,
    %c3_i32 = arith.constant 3 : i32
    %c2_i32_25 = arith.constant 2 : i32
    %39 = arith.muli %c3_i32, %c2_i32_25 : i32
    %40 = tpu.assume_multiple %39, 2 : i32
    %41 = arith.index_cast %40 : i32 to index
    %c0_26 = arith.constant 0 : index
    %42 = vector.load %arg10[%41, %c0_26] : memref<16x32xf32, #tpu.memory_space<vmem>>, vector<2x32xf32>
    %cst_27 = arith.constant dense<0.000000e+00> : vector<2x32xf32>
    %43 = tpu.matmul %36, %10, %cst_27 {dimension_numbers = #tpu.dot_dimension_numbers<[1], [0], [0], [1], [0, 0, 1, 1], [], []>} : vector<2x32xf32>, vector<32x32xf32>, vector<2x32xf32> -> vector<2x32xf32>
    %44 = arith.addf %42, %43 : vector<2x32xf32>
    %45 = math.tanh %44 : vector<2x32xf32>
    %46 = arith.index_cast %40 : i32 to index
    %c0_28 = arith.constant 0 : index
    %47 = vector.load %arg8[%46, %c0_28] : memref<16x32xf32, #tpu.memory_space<vmem>>, vector<2x32xf32>
    tpu.vector_store %arg8[%46, %c0_28], %45 {strides = array<i32>} : memref<16x32xf32, #tpu.memory_space<vmem>>, vector<2x32xf32>,
    %c4_i32 = arith.constant 4 : i32
    %c2_i32_29 = arith.constant 2 : i32
    %48 = arith.muli %c4_i32, %c2_i32_29 : i32
    %49 = tpu.assume_multiple %48, 2 : i32
    %50 = arith.index_cast %49 : i32 to index
    %c0_30 = arith.constant 0 : index
    %51 = vector.load %arg10[%50, %c0_30] : memref<16x32xf32, #tpu.memory_space<vmem>>, vector<2x32xf32>
    %cst_31 = arith.constant dense<0.000000e+00> : vector<2x32xf32>
    %52 = tpu.matmul %45, %10, %cst_31 {dimension_numbers = #tpu.dot_dimension_numbers<[1], [0], [0], [1], [0, 0, 1, 1], [], []>} : vector<2x32xf32>, vector<32x32xf32>, vector<2x32xf32> -> vector<2x32xf32>
    %53 = arith.addf %51, %52 : vector<2x32xf32>
    %54 = math.tanh %53 : vector<2x32xf32>
    %55 = arith.index_cast %49 : i32 to index
    %c0_32 = arith.constant 0 : index
    %56 = vector.load %arg8[%55, %c0_32] : memref<16x32xf32, #tpu.memory_space<vmem>>, vector<2x32xf32>
    tpu.vector_store %arg8[%55, %c0_32], %54 {strides = array<i32>} : memref<16x32xf32, #tpu.memory_space<vmem>>, vector<2x32xf32>,
    %c5_i32 = arith.constant 5 : i32
    %c2_i32_33 = arith.constant 2 : i32
    %57 = arith.muli %c5_i32, %c2_i32_33 : i32
    %58 = tpu.assume_multiple %57, 2 : i32
    %59 = arith.index_cast %58 : i32 to index
    %c0_34 = arith.constant 0 : index
    %60 = vector.load %arg10[%59, %c0_34] : memref<16x32xf32, #tpu.memory_space<vmem>>, vector<2x32xf32>
    %cst_35 = arith.constant dense<0.000000e+00> : vector<2x32xf32>
    %61 = tpu.matmul %54, %10, %cst_35 {dimension_numbers = #tpu.dot_dimension_numbers<[1], [0], [0], [1], [0, 0, 1, 1], [], []>} : vector<2x32xf32>, vector<32x32xf32>, vector<2x32xf32> -> vector<2x32xf32>
    %62 = arith.addf %60, %61 : vector<2x32xf32>
    %63 = math.tanh %62 : vector<2x32xf32>
    %64 = arith.index_cast %58 : i32 to index
    %c0_36 = arith.constant 0 : index
    %65 = vector.load %arg8[%64, %c0_36] : memref<16x32xf32, #tpu.memory_space<vmem>>, vector<2x32xf32>
    tpu.vector_store %arg8[%64, %c0_36], %63 {strides = array<i32>} : memref<16x32xf32, #tpu.memory_space<vmem>>, vector<2x32xf32>,
    %c6_i32 = arith.constant 6 : i32
    %c2_i32_37 = arith.constant 2 : i32
    %66 = arith.muli %c6_i32, %c2_i32_37 : i32
    %67 = tpu.assume_multiple %66, 2 : i32
    %68 = arith.index_cast %67 : i32 to index
    %c0_38 = arith.constant 0 : index
    %69 = vector.load %arg10[%68, %c0_38] : memref<16x32xf32, #tpu.memory_space<vmem>>, vector<2x32xf32>
    %cst_39 = arith.constant dense<0.000000e+00> : vector<2x32xf32>
    %70 = tpu.matmul %63, %10, %cst_39 {dimension_numbers = #tpu.dot_dimension_numbers<[1], [0], [0], [1], [0, 0, 1, 1], [], []>} : vector<2x32xf32>, vector<32x32xf32>, vector<2x32xf32> -> vector<2x32xf32>
    %71 = arith.addf %69, %70 : vector<2x32xf32>
    %72 = math.tanh %71 : vector<2x32xf32>
    %73 = arith.index_cast %67 : i32 to index
    %c0_40 = arith.constant 0 : index
    %74 = vector.load %arg8[%73, %c0_40] : memref<16x32xf32, #tpu.memory_space<vmem>>, vector<2x32xf32>
    tpu.vector_store %arg8[%73, %c0_40], %72 {strides = array<i32>} : memref<16x32xf32, #tpu.memory_space<vmem>>, vector<2x32xf32>,
    %c7_i32 = arith.constant 7 : i32
    %c2_i32_41 = arith.constant 2 : i32
    %75 = arith.muli %c7_i32, %c2_i32_41 : i32
    %76 = tpu.assume_multiple %75, 2 : i32
    %77 = arith.index_cast %76 : i32 to index
    %c0_42 = arith.constant 0 : index
    %78 = vector.load %arg10[%77, %c0_42] : memref<16x32xf32, #tpu.memory_space<vmem>>, vector<2x32xf32>
    %cst_43 = arith.constant dense<0.000000e+00> : vector<2x32xf32>
    %79 = tpu.matmul %72, %10, %cst_43 {dimension_numbers = #tpu.dot_dimension_numbers<[1], [0], [0], [1], [0, 0, 1, 1], [], []>} : vector<2x32xf32>, vector<32x32xf32>, vector<2x32xf32> -> vector<2x32xf32>
    %80 = arith.addf %78, %79 : vector<2x32xf32>
    %81 = math.tanh %80 : vector<2x32xf32>
    %82 = arith.index_cast %76 : i32 to index
    %c0_44 = arith.constant 0 : index
    %83 = vector.load %arg8[%82, %c0_44] : memref<16x32xf32, #tpu.memory_space<vmem>>, vector<2x32xf32>
    tpu.vector_store %arg8[%82, %c0_44], %81 {strides = array<i32>} : memref<16x32xf32, #tpu.memory_space<vmem>>, vector<2x32xf32>,
    %c8_i32 = arith.constant 8 : i32
    %c0_45 = arith.constant 0 : index
    %c0_46 = arith.constant 0 : index
    %84 = vector.load %arg9[%c0_45, %c0_46] : memref<2x32xf32, #tpu.memory_space<vmem>>, vector<2x32xf32>
    tpu.vector_store %arg9[%c0_45, %c0_46], %81 {strides = array<i32>} : memref<2x32xf32, #tpu.memory_space<vmem>>, vector<2x32xf32>,
    %c0_47 = arith.constant 0 : index
    %c0_48 = arith.constant 0 : index
    %85 = vector.load %arg8[%c0_47, %c0_48] : memref<16x32xf32, #tpu.memory_space<vmem>>, vector<16x32xf32>
    %c0_49 = arith.constant 0 : index
    %c0_50 = arith.constant 0 : index
    %86 = vector.load %arg5[%c0_49, %c0_50] : memref<32x4xf32, #tpu.memory_space<vmem>>, vector<32x4xf32>
    %cst_51 = arith.constant dense<0.000000e+00> : vector<16x4xf32>
    %87 = tpu.matmul %85, %86, %cst_51 {dimension_numbers = #tpu.dot_dimension_numbers<[1], [0], [0], [1], [0, 0, 1, 1], [], []>} : vector<16x32xf32>, vector<32x4xf32>, vector<16x4xf32> -> vector<16x4xf32>
    %c0_52 = arith.constant 0 : index
    %c0_53 = arith.constant 0 : index
    %88 = vector.load %arg6[%c0_52, %c0_53] : memref<1x4xf32, #tpu.memory_space<vmem>>, vector<1x4xf32>
    %89 = vector.broadcast %88 : vector<1x4xf32> to vector<16x4xf32>
    %90 = arith.addf %87, %89 : vector<16x4xf32>
    %c0_54 = arith.constant 0 : index
    %c0_55 = arith.constant 0 : index
    %91 = vector.load %arg7[%c0_54, %c0_55] : memref<16x4xf32, #tpu.memory_space<vmem>>, vector<16x4xf32>
    tpu.vector_store %arg7[%c0_54, %c0_55], %90 {strides = array<i32>} : memref<16x4xf32, #tpu.memory_space<vmem>>, vector<16x4xf32>,
    return
  }
  func.func @transform_0(%arg0: i32) -> (i32, i32) {
    %c0_i32 = arith.constant 0 : i32
    %c0_i32_0 = arith.constant 0 : i32
    return %arg0, %c0_i32 : i32, i32
  }
  func.func @transform_1(%arg0: i32) -> (i32, i32) {
    %c0_i32 = arith.constant 0 : i32
    %c0_i32_0 = arith.constant 0 : i32
    %c0_i32_1 = arith.constant 0 : i32
    return %c0_i32, %c0_i32_0 : i32, i32
  }
  func.func @transform_2(%arg0: i32) -> (i32, i32) {
    %c0_i32 = arith.constant 0 : i32
    %c0_i32_0 = arith.constant 0 : i32
    %c0_i32_1 = arith.constant 0 : i32
    return %c0_i32, %c0_i32_0 : i32, i32
  }
  func.func @transform_3(%arg0: i32) -> (i32, i32) {
    %c0_i32 = arith.constant 0 : i32
    %c0_i32_0 = arith.constant 0 : i32
    %c0_i32_1 = arith.constant 0 : i32
    return %c0_i32, %c0_i32_0 : i32, i32
  }
  func.func @transform_4(%arg0: i32) -> (i32, i32) {
    %c0_i32 = arith.constant 0 : i32
    %c0_i32_0 = arith.constant 0 : i32
    %c0_i32_1 = arith.constant 0 : i32
    return %c0_i32, %c0_i32_0 : i32, i32
  }
  func.func @transform_5(%arg0: i32) -> (i32, i32) {
    %c0_i32 = arith.constant 0 : i32
    %c0_i32_0 = arith.constant 0 : i32
    %c0_i32_1 = arith.constant 0 : i32
    return %c0_i32, %c0_i32_0 : i32, i32
  }
  func.func @transform_6(%arg0: i32) -> (i32, i32) {
    %c0_i32 = arith.constant 0 : i32
    %c0_i32_0 = arith.constant 0 : i32
    return %arg0, %c0_i32 : i32, i32
  }
  func.func @transform_7(%arg0: i32) -> (i32, i32) {
    %c0_i32 = arith.constant 0 : i32
    %c0_i32_0 = arith.constant 0 : i32
    return %arg0, %c0_i32 : i32, i32
  }
}

</mosaic_0001>

<llo_original>
// kernel: tpu_custom_call.1
$region0: #{tpu_custom_call.1}
  #allocation0 [shape = 'u32[]', space=smem, size = 0x4, offset = 0x4, fixed_abs, tag = 'smem constant byte address 0x4 - core index']
  #allocation1 [shape = 'u32[144,128]{1,0:T(1,128)}', space=vmem, size = 0x12000, scoped, tag = 'internal scratch']
  #allocation2 [shape = 'f32[2,32]{1,0:T(2,128)}', space=vmem, size = 0x400, scoped, tag = 'scratch operand']
  #allocation3 [shape = 'f32[16,32]{1,0:T(8,128)}', space=vmem, size = 0x2000, scoped, tag = 'scratch operand']
  %s0 = inlined_call_operand.vmem [shape: f32[16,8], index: 0, kind: input, shape index: {}]
  %s1 = inlined_call_operand.vmem [shape: f32[8,32], index: 1, kind: input, shape index: {}]
  %s2 = inlined_call_operand.vmem [shape: f32[32,32], index: 2, kind: input, shape index: {}]
  %s3 = inlined_call_operand.vmem [shape: f32[1,32], index: 3, kind: input, shape index: {}]
  %s4 = inlined_call_operand.vmem [shape: f32[32,4], index: 4, kind: input, shape index: {}]
  %s5 = inlined_call_operand.vmem [shape: f32[1,4], index: 5, kind: input, shape index: {}]
  %s6 = inlined_call_operand.vmem [shape: f32[16,4], index: 6, kind: output, shape index: {0}]
  %s7 = inlined_call_operand.hbm [shape: f32[16,32], index: 7, kind: output, shape index: {1}]
  %8 = xla_tuple %s6, %s7
  %s9 = sld [smem:[#allocation0]]
  $region46: #{tpu_custom_call.1} parent=0
    _
  %s11 = ssub.s32 1, %s9
  %s12 = scalar_select 0, %s11, %s9
  $region1: #{tpu_custom_call.1} parent=0
    #allocation4 [shape = 'u8[8192]{0}', space=vmem, size = 0x2000, scoped, tag = 'output window, operand 1, single buffered']
    #allocation5 [shape = 's32[1]{0}', space=sflag, size = 0x4, scoped, tag = 'scoped memory for tpu_custom_call.1']
    %13 = vsyncpa [#allocation5], 0
    // Predicated region
    $region2: #{tpu_custom_call.1} parent=1 // pred_check
      _
    $region3: #{tpu_custom_call.1} parent=1 // pred_check_branch
      %15 = sbr.rel (0) target = $region5
    $region4: #{tpu_custom_call.1} parent=1 // pred_region
      _
    $region5: #{tpu_custom_call.1} parent=1 // pred_fallthru
      _
    // Predicated region
    $region6: #{tpu_custom_call.1} parent=1 // pred_check
      _
    $region7: #{tpu_custom_call.1} parent=1 // pred_check_branch
      %17 = sbr.rel (0) target = $region9
    $region8: #{tpu_custom_call.1} parent=1 // pred_region
      _
    $region9: #{tpu_custom_call.1} parent=1 // pred_fallthru
      _
    // Predicated region
    $region10: #{tpu_custom_call.1} parent=1 // pred_check
      _
    $region11: #{tpu_custom_call.1} parent=1 // pred_check_branch
      %19 = sbr.rel (0) target = $region13
    $region12: #{tpu_custom_call.1} parent=1 // pred_region
      _
    $region13: #{tpu_custom_call.1} parent=1 // pred_fallthru
      _
    // Predicated region
    $region14: #{tpu_custom_call.1} parent=1 // pred_check
      _
    $region15: #{tpu_custom_call.1} parent=1 // pred_check_branch
      %21 = sbr.rel (0) target = $region17
    $region16: #{tpu_custom_call.1} parent=1 // pred_region
      _
    $region17: #{tpu_custom_call.1} parent=1 // pred_fallthru
      _
    // Predicated region
    $region18: #{tpu_custom_call.1} parent=1 // pred_check
      _
    $region19: #{tpu_custom_call.1} parent=1 // pred_check_branch
      %23 = sbr.rel (0) target = $region21
    $region20: #{tpu_custom_call.1} parent=1 // pred_region
      _
    $region21: #{tpu_custom_call.1} parent=1 // pred_fallthru
      _
    // Predicated region
    $region22: #{tpu_custom_call.1} parent=1 // pred_check
      _
    $region23: #{tpu_custom_call.1} parent=1 // pred_check_branch
      %25 = sbr.rel (0) target = $region25
    $region24: #{tpu_custom_call.1} parent=1 // pred_region
      _
    $region25: #{tpu_custom_call.1} parent=1 // pred_fallthru
      _
    %p26 = scmp.eq.s32.totalorder 0, 0
    // Predicated region
    $region26: #{tpu_custom_call.1} parent=1 // pred_check
      %p27 = pneg %p26
    $region27: #{tpu_custom_call.1} parent=1 // pred_check_branch
      %29 = sbr.rel (%p27) target = $region29
    $region28: #{tpu_custom_call.1} parent=1 // pred_region
      %vm30 = vcmask 254976
      %31 = vst.msk [vmem:[#allocation2] sm:$0x3] %vm30, 0.0
    $region29: #{tpu_custom_call.1} parent=1 // pred_fallthru
      _
    %v32 = vld [vmem:[%s0] sm:$0xff]
    %v33 = vld [vmem:[%s0 + $0x8] sm:$0xff]
    %v34 = vld [vmem:[%s1] sm:$0xff]
    %v35 = vld [vmem:[%s3] sm:$0x1]
    %v37 = vlaneseq
    %v38 = vshrl.u32 %v37, 7
    %v39 = vsub.s32 0, %v38
    %v40 = vrot.slane %v35, %v39
    %vm42 = vcmask 64512
    %v44 = vsel %vm42, %v32, 0
    %v47 = vsel %vm42, %v33, 0
    %49 = vmatprep.subr.mxu0 0.0
    %50 = vmatpush1.msra.mxu0 %v34
    %51 = vmatprep.subr.mxu0 0.0
    %52 = vmatpush1.msra.mxu0 0.0
    %53 = vmatprep.subr.mxu0 0.0
    %54 = vmatpush1.msra.mxu0 0.0
    %55 = vmatprep.subr.mxu0 0.0
    %56 = vmatpush1.msra.mxu0 0.0
    %57 = vmatprep.subr.mxu0 0.0
    %58 = vmatpush1.msra.mxu0 0.0
    %59 = vmatprep.subr.mxu0 0.0
    %60 = vmatpush1.msra.mxu0 0.0
    %61 = vmatprep.subr.mxu0 0.0
    %62 = vmatpush1.msra.mxu0 0.0
    %63 = vmatprep.subr.mxu0 0.0
    %64 = vmatpush1.msra.mxu0 0.0
    %65 = vmatprep.subr.mxu0 0.0
    %66 = vmatpush1.msra.mxu0 0.0
    %67 = vmatprep.subr.mxu0 0.0
    %68 = vmatpush1.msra.mxu0 0.0
    %69 = vmatprep.subr.mxu0 0.0
    %70 = vmatpush1.msra.mxu0 0.0
    %71 = vmatprep.subr.mxu0 0.0
    %72 = vmatpush1.msra.mxu0 0.0
    %73 = vmatprep.subr.mxu0 0.0
    %74 = vmatpush1.msra.mxu0 0.0
    %75 = vmatprep.subr.mxu0 0.0
    %76 = vmatpush1.msra.mxu0 0.0
    %77 = vmatprep.subr.mxu0 0.0
    %78 = vmatpush1.msra.mxu0 0.0
    %79 = vmatprep.subr.mxu0 0.0
    %80 = vmatpush1.msra.mxu0 0.0
    %81 = vmatprep.subr.mxu0 0.0
    %82 = vmatpush1.msra.mxu0 0.0
    %83 = vmatprep.subr.mxu0 0.0
    %84 = vmatpush1.msra.mxu0 0.0
    %85 = vmatprep.subr.mxu0 0.0
    %86 = vmatpush1.msra.mxu0 0.0
    %87 = vmatprep.subr.mxu0 0.0
    %88 = vmatpush1.msra.mxu0 0.0
    %89 = vmatprep.subr.mxu0 0.0
    %90 = vmatpush1.msra.mxu0 0.0
    %91 = vmatprep.subr.mxu0 0.0
    %92 = vmatpush1.msra.mxu0 0.0
    %93 = vmatprep.subr.mxu0 0.0
    %94 = vmatpush1.msra.mxu0 0.0
    %95 = vmatprep.subr.mxu0 0.0
    %96 = vmatpush1.msra.mxu0 0.0
    %97 = vmatprep.subr.mxu0 0.0
    %98 = vmatpush1.msra.mxu0 0.0
    %99 = vmatprep.subr.mxu0 0.0
    %100 = vmatpush1.msra.mxu0 0.0
    %101 = vmatprep.subr.mxu0 0.0
    %102 = vmatpush1.msra.mxu0 0.0
    %103 = vmatprep.subr.mxu0 0.0
    %104 = vmatpush1.msra.mxu0 0.0
    %105 = vmatprep.subr.mxu0 0.0
    %106 = vmatpush1.msra.mxu0 0.0
    %107 = vmatprep.subr.mxu0 0.0
    %108 = vmatpush1.msra.mxu0 0.0
    %109 = vmatprep.subr.mxu0 0.0
    %110 = vmatpush1.msra.mxu0 0.0
    %111 = vmatprep.subr.mxu0 0.0
    %112 = vmatpush1.msra.mxu0 0.0
    %113 = vmatprep.mubr.f32.mxu0 0.0
    %114 = vmatmul.mubr.f32.gmra.mrb[0].mxu0 %v44
    %v115 = vpop.f32.mrb[0].mxu0
    %v116 = vadd.f32 %v40, %v115
    %v117 = vpop.f32.mrb[0].mxu0
    %118 = vmatprep.mubr.f32.mxu0 0.0
    %119 = vmatmul.mubr.f32.gmra.mrb[0].mxu0 %v47
    %v120 = vpop.f32.mrb[0].mxu0
    %v121 = vadd.f32 %v40, %v120
    %v122 = vpop.f32.mrb[0].mxu0
    %123 = vdwg.mxu0
    %vm124 = vcmask 261120
    %125 = vst.msk [vmem:[#allocation3] sm:$0xff] %vm124, %v116
    %126 = vst.msk [vmem:[#allocation3 + $0x8] sm:$0xff] %vm124, %v121
    %v127 = vld [vmem:[%s2] sm:$0xff]
    %v128 = vld [vmem:[%s2 + $0x8] sm:$0xff]
    %v129 = vld [vmem:[%s2 + $0x10] sm:$0xff]
    %v130 = vld [vmem:[%s2 + $0x18] sm:$0xff]
    %v131 = vld [vmem:[#allocation2] sm:$0x3]
    %v132 = vld [vmem:[#allocation3] sm:$0x3]
    %v134 = vsel %vm124, %v131, 0
    %136 = vmatprep.subr.mxu0 0.0
    %137 = vmatpush1.msra.mxu0 %v127
    %138 = vmatprep.subr.mxu0 0.0
    %139 = vmatpush1.msra.mxu0 %v128
    %140 = vmatprep.subr.mxu0 0.0
    %141 = vmatpush1.msra.mxu0 %v129
    %142 = vmatprep.subr.mxu0 0.0
    %143 = vmatpush1.msra.mxu0 %v130
    %144 = vmatprep.subr.mxu0 0.0
    %145 = vmatpush1.msra.mxu0 0.0
    %146 = vmatprep.subr.mxu0 0.0
    %147 = vmatpush1.msra.mxu0 0.0
    %148 = vmatprep.subr.mxu0 0.0
    %149 = vmatpush1.msra.mxu0 0.0
    %150 = vmatprep.subr.mxu0 0.0
    %151 = vmatpush1.msra.mxu0 0.0
    %152 = vmatprep.subr.mxu0 0.0
    %153 = vmatpush1.msra.mxu0 0.0
    %154 = vmatprep.subr.mxu0 0.0
    %155 = vmatpush1.msra.mxu0 0.0
    %156 = vmatprep.subr.mxu0 0.0
    %157 = vmatpush1.msra.mxu0 0.0
    %158 = vmatprep.subr.mxu0 0.0
    %159 = vmatpush1.msra.mxu0 0.0
    %160 = vmatprep.subr.mxu0 0.0
    %161 = vmatpush1.msra.mxu0 0.0
    %162 = vmatprep.subr.mxu0 0.0
    %163 = vmatpush1.msra.mxu0 0.0
    %164 = vmatprep.subr.mxu0 0.0
    %165 = vmatpush1.msra.mxu0 0.0
    %166 = vmatprep.subr.mxu0 0.0
    %167 = vmatpush1.msra.mxu0 0.0
    %168 = vmatprep.subr.mxu0 0.0
    %169 = vmatpush1.msra.mxu0 0.0
    %170 = vmatprep.subr.mxu0 0.0
    %171 = vmatpush1.msra.mxu0 0.0
    %172 = vmatprep.subr.mxu0 0.0
    %173 = vmatpush1.msra.mxu0 0.0
    %174 = vmatprep.subr.mxu0 0.0
    %175 = vmatpush1.msra.mxu0 0.0
    %176 = vmatprep.subr.mxu0 0.0
    %177 = vmatpush1.msra.mxu0 0.0
    %178 = vmatprep.subr.mxu0 0.0
    %179 = vmatpush1.msra.mxu0 0.0
    %180 = vmatprep.subr.mxu0 0.0
    %181 = vmatpush1.msra.mxu0 0.0
    %182 = vmatprep.subr.mxu0 0.0
    %183 = vmatpush1.msra.mxu0 0.0
    %184 = vmatprep.subr.mxu0 0.0
    %185 = vmatpush1.msra.mxu0 0.0
    %186 = vmatprep.subr.mxu0 0.0
    %187 = vmatpush1.msra.mxu0 0.0
    %188 = vmatprep.subr.mxu0 0.0
    %189 = vmatpush1.msra.mxu0 0.0
    %190 = vmatprep.subr.mxu0 0.0
    %191 = vmatpush1.msra.mxu0 0.0
    %192 = vmatprep.subr.mxu0 0.0
    %193 = vmatpush1.msra.mxu0 0.0
    %194 = vmatprep.subr.mxu0 0.0
    %195 = vmatpush1.msra.mxu0 0.0
    %196 = vmatprep.subr.mxu0 0.0
    %197 = vmatpush1.msra.mxu0 0.0
    %198 = vmatprep.subr.mxu0 0.0
    %199 = vmatpush1.msra.mxu0 0.0
    %200 = vmatprep.mubr.f32.mxu0 0.0
    %201 = vmatmul.mubr.f32.gmra.mrb[0].mxu0 %v134
    %v202 = vpop.f32.mrb[0].mxu0
    %v203 = vadd.f32 0.0, %v202
    %v204 = vpop.f32.mrb[0].mxu0
    %205 = vdwg.mxu0
    %v206 = vadd.f32 %v132, %v203
    %v207 = vtanh.pop %v206
    %vm208 = vcmask 254976
    %209 = vst.msk [vmem:[#allocation4] sm:$0x3] %vm208, %v207
    %s210 = scalar_lea.vmem [#allocation3], 2
    %v211 = vld [vmem:[%s210] sm:$0x3]
    %v213 = vsel %vm124, %v207, 0
    %215 = vmatprep.subr.mxu0 0.0
    %216 = vmatpush1.msra.mxu0 %v127
    %217 = vmatprep.subr.mxu0 0.0
    %218 = vmatpush1.msra.mxu0 %v128
    %219 = vmatprep.subr.mxu0 0.0
    %220 = vmatpush1.msra.mxu0 %v129
    %221 = vmatprep.subr.mxu0 0.0
    %222 = vmatpush1.msra.mxu0 %v130
    %223 = vmatprep.subr.mxu0 0.0
    %224 = vmatpush1.msra.mxu0 0.0
    %225 = vmatprep.subr.mxu0 0.0
    %226 = vmatpush1.msra.mxu0 0.0
    %227 = vmatprep.subr.mxu0 0.0
    %228 = vmatpush1.msra.mxu0 0.0
    %229 = vmatprep.subr.mxu0 0.0
    %230 = vmatpush1.msra.mxu0 0.0
    %231 = vmatprep.subr.mxu0 0.0
    %232 = vmatpush1.msra.mxu0 0.0
    %233 = vmatprep.subr.mxu0 0.0
    %234 = vmatpush1.msra.mxu0 0.0
    %235 = vmatprep.subr.mxu0 0.0
    %236 = vmatpush1.msra.mxu0 0.0
    %237 = vmatprep.subr.mxu0 0.0
    %238 = vmatpush1.msra.mxu0 0.0
    %239 = vmatprep.subr.mxu0 0.0
    %240 = vmatpush1.msra.mxu0 0.0
    %241 = vmatprep.subr.mxu0 0.0
    %242 = vmatpush1.msra.mxu0 0.0
    %243 = vmatprep.subr.mxu0 0.0
    %244 = vmatpush1.msra.mxu0 0.0
    %245 = vmatprep.subr.mxu0 0.0
    %246 = vmatpush1.msra.mxu0 0.0
    %247 = vmatprep.subr.mxu0 0.0
    %248 = vmatpush1.msra.mxu0 0.0
    %249 = vmatprep.subr.mxu0 0.0
    %250 = vmatpush1.msra.mxu0 0.0
    %251 = vmatprep.subr.mxu0 0.0
    %252 = vmatpush1.msra.mxu0 0.0
    %253 = vmatprep.subr.mxu0 0.0
    %254 = vmatpush1.msra.mxu0 0.0
    %255 = vmatprep.subr.mxu0 0.0
    %256 = vmatpush1.msra.mxu0 0.0
    %257 = vmatprep.subr.mxu0 0.0
    %258 = vmatpush1.msra.mxu0 0.0
    %259 = vmatprep.subr.mxu0 0.0
    %260 = vmatpush1.msra.mxu0 0.0
    %261 = vmatprep.subr.mxu0 0.0
    %262 = vmatpush1.msra.mxu0 0.0
    %263 = vmatprep.subr.mxu0 0.0
    %264 = vmatpush1.msra.mxu0 0.0
    %265 = vmatprep.subr.mxu0 0.0
    %266 = vmatpush1.msra.mxu0 0.0
    %267 = vmatprep.subr.mxu0 0.0
    %268 = vmatpush1.msra.mxu0 0.0
    %269 = vmatprep.subr.mxu0 0.0
    %270 = vmatpush1.msra.mxu0 0.0
    %271 = vmatprep.subr.mxu0 0.0
    %272 = vmatpush1.msra.mxu0 0.0
    %273 = vmatprep.subr.mxu0 0.0
    %274 = vmatpush1.msra.mxu0 0.0
    %275 = vmatprep.subr.mxu0 0.0
    %276 = vmatpush1.msra.mxu0 0.0
    %277 = vmatprep.subr.mxu0 0.0
    %278 = vmatpush1.msra.mxu0 0.0
    %279 = vmatprep.mubr.f32.mxu0 0.0
    %280 = vmatmul.mubr.f32.gmra.mrb[0].mxu0 %v213
    %v281 = vpop.f32.mrb[0].mxu0
    %v282 = vadd.f32 0.0, %v281
    %v283 = vpop.f32.mrb[0].mxu0
    %284 = vdwg.mxu0
    %v285 = vadd.f32 %v211, %v282
    %v286 = vtanh.pop %v285
    %s287 = scalar_lea.vmem [#allocation4], 2
    %288 = vst.msk [vmem:[%s287] sm:$0x3] %vm208, %v286
    %s289 = scalar_lea.vmem [#allocation3], 4
    %v290 = vld [vmem:[%s289] sm:$0x3]
    %v292 = vsel %vm124, %v286, 0
    %294 = vmatprep.subr.mxu0 0.0
    %295 = vmatpush1.msra.mxu0 %v127
    %296 = vmatprep.subr.mxu0 0.0
    %297 = vmatpush1.msra.mxu0 %v128
    %298 = vmatprep.subr.mxu0 0.0
    %299 = vmatpush1.msra.mxu0 %v129
    %300 = vmatprep.subr.mxu0 0.0
    %301 = vmatpush1.msra.mxu0 %v130
    %302 = vmatprep.subr.mxu0 0.0
    %303 = vmatpush1.msra.mxu0 0.0
    %304 = vmatprep.subr.mxu0 0.0
    %305 = vmatpush1.msra.mxu0 0.0
    %306 = vmatprep.subr.mxu0 0.0
    %307 = vmatpush1.msra.mxu0 0.0
    %308 = vmatprep.subr.mxu0 0.0
    %309 = vmatpush1.msra.mxu0 0.0
    %310 = vmatprep.subr.mxu0 0.0
    %311 = vmatpush1.msra.mxu0 0.0
    %312 = vmatprep.subr.mxu0 0.0
    %313 = vmatpush1.msra.mxu0 0.0
    %314 = vmatprep.subr.mxu0 0.0
    %315 = vmatpush1.msra.mxu0 0.0
    %316 = vmatprep.subr.mxu0 0.0
    %317 = vmatpush1.msra.mxu0 0.0
    %318 = vmatprep.subr.mxu0 0.0
    %319 = vmatpush1.msra.mxu0 0.0
    %320 = vmatprep.subr.mxu0 0.0
    %321 = vmatpush1.msra.mxu0 0.0
    %322 = vmatprep.subr.mxu0 0.0
    %323 = vmatpush1.msra.mxu0 0.0
    %324 = vmatprep.subr.mxu0 0.0
    %325 = vmatpush1.msra.mxu0 0.0
    %326 = vmatprep.subr.mxu0 0.0
    %327 = vmatpush1.msra.mxu0 0.0
    %328 = vmatprep.subr.mxu0 0.0
    %329 = vmatpush1.msra.mxu0 0.0
    %330 = vmatprep.subr.mxu0 0.0
    %331 = vmatpush1.msra.mxu0 0.0
    %332 = vmatprep.subr.mxu0 0.0
    %333 = vmatpush1.msra.mxu0 0.0
    %334 = vmatprep.subr.mxu0 0.0
    %335 = vmatpush1.msra.mxu0 0.0
    %336 = vmatprep.subr.mxu0 0.0
    %337 = vmatpush1.msra.mxu0 0.0
    %338 = vmatprep.subr.mxu0 0.0
    %339 = vmatpush1.msra.mxu0 0.0
    %340 = vmatprep.subr.mxu0 0.0
    %341 = vmatpush1.msra.mxu0 0.0
    %342 = vmatprep.subr.mxu0 0.0
    %343 = vmatpush1.msra.mxu0 0.0
    %344 = vmatprep.subr.mxu0 0.0
    %345 = vmatpush1.msra.mxu0 0.0
    %346 = vmatprep.subr.mxu0 0.0
    %347 = vmatpush1.msra.mxu0 0.0
    %348 = vmatprep.subr.mxu0 0.0
    %349 = vmatpush1.msra.mxu0 0.0
    %350 = vmatprep.subr.mxu0 0.0
    %351 = vmatpush1.msra.mxu0 0.0
    %352 = vmatprep.subr.mxu0 0.0
    %353 = vmatpush1.msra.mxu0 0.0
    %354 = vmatprep.subr.mxu0 0.0
    %355 = vmatpush1.msra.mxu0 0.0
    %356 = vmatprep.subr.mxu0 0.0
    %357 = vmatpush1.msra.mxu0 0.0
    %358 = vmatprep.mubr.f32.mxu0 0.0
    %359 = vmatmul.mubr.f32.gmra.mrb[0].mxu0 %v292
    %v360 = vpop.f32.mrb[0].mxu0
    %v361 = vadd.f32 0.0, %v360
    %v362 = vpop.f32.mrb[0].mxu0
    %363 = vdwg.mxu0
    %v364 = vadd.f32 %v290, %v361
    %v365 = vtanh.pop %v364
    %s366 = scalar_lea.vmem [#allocation4], 4
    %367 = vst.msk [vmem:[%s366] sm:$0x3] %vm208, %v365
    %s368 = scalar_lea.vmem [#allocation3], 6
    %v369 = vld [vmem:[%s368] sm:$0x3]
    %v371 = vsel %vm124, %v365, 0
    %373 = vmatprep.subr.mxu0 0.0
    %374 = vmatpush1.msra.mxu0 %v127
    %375 = vmatprep.subr.mxu0 0.0
    %376 = vmatpush1.msra.mxu0 %v128
    %377 = vmatprep.subr.mxu0 0.0
    %378 = vmatpush1.msra.mxu0 %v129
    %379 = vmatprep.subr.mxu0 0.0
    %380 = vmatpush1.msra.mxu0 %v130
    %381 = vmatprep.subr.mxu0 0.0
    %382 = vmatpush1.msra.mxu0 0.0
    %383 = vmatprep.subr.mxu0 0.0
    %384 = vmatpush1.msra.mxu0 0.0
    %385 = vmatprep.subr.mxu0 0.0
    %386 = vmatpush1.msra.mxu0 0.0
    %387 = vmatprep.subr.mxu0 0.0
    %388 = vmatpush1.msra.mxu0 0.0
    %389 = vmatprep.subr.mxu0 0.0
    %390 = vmatpush1.msra.mxu0 0.0
    %391 = vmatprep.subr.mxu0 0.0
    %392 = vmatpush1.msra.mxu0 0.0
    %393 = vmatprep.subr.mxu0 0.0
    %394 = vmatpush1.msra.mxu0 0.0
    %395 = vmatprep.subr.mxu0 0.0
    %396 = vmatpush1.msra.mxu0 0.0
    %397 = vmatprep.subr.mxu0 0.0
    %398 = vmatpush1.msra.mxu0 0.0
    %399 = vmatprep.subr.mxu0 0.0
    %400 = vmatpush1.msra.mxu0 0.0
    %401 = vmatprep.subr.mxu0 0.0
    %402 = vmatpush1.msra.mxu0 0.0
    %403 = vmatprep.subr.mxu0 0.0
    %404 = vmatpush1.msra.mxu0 0.0
    %405 = vmatprep.subr.mxu0 0.0
    %406 = vmatpush1.msra.mxu0 0.0
    %407 = vmatprep.subr.mxu0 0.0
    %408 = vmatpush1.msra.mxu0 0.0
    %409 = vmatprep.subr.mxu0 0.0
    %410 = vmatpush1.msra.mxu0 0.0
    %411 = vmatprep.subr.mxu0 0.0
    %412 = vmatpush1.msra.mxu0 0.0
    %413 = vmatprep.subr.mxu0 0.0
    %414 = vmatpush1.msra.mxu0 0.0
    %415 = vmatprep.subr.mxu0 0.0
    %416 = vmatpush1.msra.mxu0 0.0
    %417 = vmatprep.subr.mxu0 0.0
    %418 = vmatpush1.msra.mxu0 0.0
    %419 = vmatprep.subr.mxu0 0.0
    %420 = vmatpush1.msra.mxu0 0.0
    %421 = vmatprep.subr.mxu0 0.0
    %422 = vmatpush1.msra.mxu0 0.0
    %423 = vmatprep.subr.mxu0 0.0
    %424 = vmatpush1.msra.mxu0 0.0
    %425 = vmatprep.subr.mxu0 0.0
    %426 = vmatpush1.msra.mxu0 0.0
    %427 = vmatprep.subr.mxu0 0.0
    %428 = vmatpush1.msra.mxu0 0.0
    %429 = vmatprep.subr.mxu0 0.0
    %430 = vmatpush1.msra.mxu0 0.0
    %431 = vmatprep.subr.mxu0 0.0
    %432 = vmatpush1.msra.mxu0 0.0
    %433 = vmatprep.subr.mxu0 0.0
    %434 = vmatpush1.msra.mxu0 0.0
    %435 = vmatprep.subr.mxu0 0.0
    %436 = vmatpush1.msra.mxu0 0.0
    %437 = vmatprep.mubr.f32.mxu0 0.0
    %438 = vmatmul.mubr.f32.gmra.mrb[0].mxu0 %v371
    %v439 = vpop.f32.mrb[0].mxu0
    %v440 = vadd.f32 0.0, %v439
    %v441 = vpop.f32.mrb[0].mxu0
    %442 = vdwg.mxu0
    %v443 = vadd.f32 %v369, %v440
    %v444 = vtanh.pop %v443
    %s445 = scalar_lea.vmem [#allocation4], 6
    %446 = vst.msk [vmem:[%s445] sm:$0x3] %vm208, %v444
    %s447 = scalar_lea.vmem [#allocation3], 8
    %v448 = vld [vmem:[%s447] sm:$0x3]
    %v450 = vsel %vm124, %v444, 0
    %452 = vmatprep.subr.mxu0 0.0
    %453 = vmatpush1.msra.mxu0 %v127
    %454 = vmatprep.subr.mxu0 0.0
    %455 = vmatpush1.msra.mxu0 %v128
    %456 = vmatprep.subr.mxu0 0.0
    %457 = vmatpush1.msra.mxu0 %v129
    %458 = vmatprep.subr.mxu0 0.0
    %459 = vmatpush1.msra.mxu0 %v130
    %460 = vmatprep.subr.mxu0 0.0
    %461 = vmatpush1.msra.mxu0 0.0
    %462 = vmatprep.subr.mxu0 0.0
    %463 = vmatpush1.msra.mxu0 0.0
    %464 = vmatprep.subr.mxu0 0.0
    %465 = vmatpush1.msra.mxu0 0.0
    %466 = vmatprep.subr.mxu0 0.0
    %467 = vmatpush1.msra.mxu0 0.0
    %468 = vmatprep.subr.mxu0 0.0
    %469 = vmatpush1.msra.mxu0 0.0
    %470 = vmatprep.subr.mxu0 0.0
    %471 = vmatpush1.msra.mxu0 0.0
    %472 = vmatprep.subr.mxu0 0.0
    %473 = vmatpush1.msra.mxu0 0.0
    %474 = vmatprep.subr.mxu0 0.0
    %475 = vmatpush1.msra.mxu0 0.0
    %476 = vmatprep.subr.mxu0 0.0
    %477 = vmatpush1.msra.mxu0 0.0
    %478 = vmatprep.subr.mxu0 0.0
    %479 = vmatpush1.msra.mxu0 0.0
    %480 = vmatprep.subr.mxu0 0.0
    %481 = vmatpush1.msra.mxu0 0.0
    %482 = vmatprep.subr.mxu0 0.0
    %483 = vmatpush1.msra.mxu0 0.0
    %484 = vmatprep.subr.mxu0 0.0
    %485 = vmatpush1.msra.mxu0 0.0
    %486 = vmatprep.subr.mxu0 0.0
    %487 = vmatpush1.msra.mxu0 0.0
    %488 = vmatprep.subr.mxu0 0.0
    %489 = vmatpush1.msra.mxu0 0.0
    %490 = vmatprep.subr.mxu0 0.0
    %491 = vmatpush1.msra.mxu0 0.0
    %492 = vmatprep.subr.mxu0 0.0
    %493 = vmatpush1.msra.mxu0 0.0
    %494 = vmatprep.subr.mxu0 0.0
    %495 = vmatpush1.msra.mxu0 0.0
    %496 = vmatprep.subr.mxu0 0.0
    %497 = vmatpush1.msra.mxu0 0.0
    %498 = vmatprep.subr.mxu0 0.0
    %499 = vmatpush1.msra.mxu0 0.0
    %500 = vmatprep.subr.mxu0 0.0
    %501 = vmatpush1.msra.mxu0 0.0
    %502 = vmatprep.subr.mxu0 0.0
    %503 = vmatpush1.msra.mxu0 0.0
    %504 = vmatprep.subr.mxu0 0.0
    %505 = vmatpush1.msra.mxu0 0.0
    %506 = vmatprep.subr.mxu0 0.0
    %507 = vmatpush1.msra.mxu0 0.0
    %508 = vmatprep.subr.mxu0 0.0
    %509 = vmatpush1.msra.mxu0 0.0
    %510 = vmatprep.subr.mxu0 0.0
    %511 = vmatpush1.msra.mxu0 0.0
    %512 = vmatprep.subr.mxu0 0.0
    %513 = vmatpush1.msra.mxu0 0.0
    %514 = vmatprep.subr.mxu0 0.0
    %515 = vmatpush1.msra.mxu0 0.0
    %516 = vmatprep.mubr.f32.mxu0 0.0
    %517 = vmatmul.mubr.f32.gmra.mrb[0].mxu0 %v450
    %v518 = vpop.f32.mrb[0].mxu0
    %v519 = vadd.f32 0.0, %v518
    %v520 = vpop.f32.mrb[0].mxu0
    %521 = vdwg.mxu0
    %v522 = vadd.f32 %v448, %v519
    %v523 = vtanh.pop %v522
    %s524 = scalar_lea.vmem [#allocation4], 8
    %525 = vst.msk [vmem:[%s524] sm:$0x3] %vm208, %v523
    %s526 = scalar_lea.vmem [#allocation3], 10
    %v527 = vld [vmem:[%s526] sm:$0x3]
    %v529 = vsel %vm124, %v523, 0
    %531 = vmatprep.subr.mxu0 0.0
    %532 = vmatpush1.msra.mxu0 %v127
    %533 = vmatprep.subr.mxu0 0.0
    %534 = vmatpush1.msra.mxu0 %v128
    %535 = vmatprep.subr.mxu0 0.0
    %536 = vmatpush1.msra.mxu0 %v129
    %537 = vmatprep.subr.mxu0 0.0
    %538 = vmatpush1.msra.mxu0 %v130
    %539 = vmatprep.subr.mxu0 0.0
    %540 = vmatpush1.msra.mxu0 0.0
    %541 = vmatprep.subr.mxu0 0.0
    %542 = vmatpush1.msra.mxu0 0.0
    %543 = vmatprep.subr.mxu0 0.0
    %544 = vmatpush1.msra.mxu0 0.0
    %545 = vmatprep.subr.mxu0 0.0
    %546 = vmatpush1.msra.mxu0 0.0
    %547 = vmatprep.subr.mxu0 0.0
    %548 = vmatpush1.msra.mxu0 0.0
    %549 = vmatprep.subr.mxu0 0.0
    %550 = vmatpush1.msra.mxu0 0.0
    %551 = vmatprep.subr.mxu0 0.0
    %552 = vmatpush1.msra.mxu0 0.0
    %553 = vmatprep.subr.mxu0 0.0
    %554 = vmatpush1.msra.mxu0 0.0
    %555 = vmatprep.subr.mxu0 0.0
    %556 = vmatpush1.msra.mxu0 0.0
    %557 = vmatprep.subr.mxu0 0.0
    %558 = vmatpush1.msra.mxu0 0.0
    %559 = vmatprep.subr.mxu0 0.0
    %560 = vmatpush1.msra.mxu0 0.0
    %561 = vmatprep.subr.mxu0 0.0
    %562 = vmatpush1.msra.mxu0 0.0
    %563 = vmatprep.subr.mxu0 0.0
    %564 = vmatpush1.msra.mxu0 0.0
    %565 = vmatprep.subr.mxu0 0.0
    %566 = vmatpush1.msra.mxu0 0.0
    %567 = vmatprep.subr.mxu0 0.0
    %568 = vmatpush1.msra.mxu0 0.0
    %569 = vmatprep.subr.mxu0 0.0
    %570 = vmatpush1.msra.mxu0 0.0
    %571 = vmatprep.subr.mxu0 0.0
    %572 = vmatpush1.msra.mxu0 0.0
    %573 = vmatprep.subr.mxu0 0.0
    %574 = vmatpush1.msra.mxu0 0.0
    %575 = vmatprep.subr.mxu0 0.0
    %576 = vmatpush1.msra.mxu0 0.0
    %577 = vmatprep.subr.mxu0 0.0
    %578 = vmatpush1.msra.mxu0 0.0
    %579 = vmatprep.subr.mxu0 0.0
    %580 = vmatpush1.msra.mxu0 0.0
    %581 = vmatprep.subr.mxu0 0.0
    %582 = vmatpush1.msra.mxu0 0.0
    %583 = vmatprep.subr.mxu0 0.0
    %584 = vmatpush1.msra.mxu0 0.0
    %585 = vmatprep.subr.mxu0 0.0
    %586 = vmatpush1.msra.mxu0 0.0
    %587 = vmatprep.subr.mxu0 0.0
    %588 = vmatpush1.msra.mxu0 0.0
    %589 = vmatprep.subr.mxu0 0.0
    %590 = vmatpush1.msra.mxu0 0.0
    %591 = vmatprep.subr.mxu0 0.0
    %592 = vmatpush1.msra.mxu0 0.0
    %593 = vmatprep.subr.mxu0 0.0
    %594 = vmatpush1.msra.mxu0 0.0
    %595 = vmatprep.mubr.f32.mxu0 0.0
    %596 = vmatmul.mubr.f32.gmra.mrb[0].mxu0 %v529
    %v597 = vpop.f32.mrb[0].mxu0
    %v598 = vadd.f32 0.0, %v597
    %v599 = vpop.f32.mrb[0].mxu0
    %600 = vdwg.mxu0
    %v601 = vadd.f32 %v527, %v598
    %v602 = vtanh.pop %v601
    %s603 = scalar_lea.vmem [#allocation4], 10
    %604 = vst.msk [vmem:[%s603] sm:$0x3] %vm208, %v602
    %s605 = scalar_lea.vmem [#allocation3], 12
    %v606 = vld [vmem:[%s605] sm:$0x3]
    %v608 = vsel %vm124, %v602, 0
    %610 = vmatprep.subr.mxu0 0.0
    %611 = vmatpush1.msra.mxu0 %v127
    %612 = vmatprep.subr.mxu0 0.0
    %613 = vmatpush1.msra.mxu0 %v128
    %614 = vmatprep.subr.mxu0 0.0
    %615 = vmatpush1.msra.mxu0 %v129
    %616 = vmatprep.subr.mxu0 0.0
    %617 = vmatpush1.msra.mxu0 %v130
    %618 = vmatprep.subr.mxu0 0.0
    %619 = vmatpush1.msra.mxu0 0.0
    %620 = vmatprep.subr.mxu0 0.0
    %621 = vmatpush1.msra.mxu0 0.0
    %622 = vmatprep.subr.mxu0 0.0
    %623 = vmatpush1.msra.mxu0 0.0
    %624 = vmatprep.subr.mxu0 0.0
    %625 = vmatpush1.msra.mxu0 0.0
    %626 = vmatprep.subr.mxu0 0.0
    %627 = vmatpush1.msra.mxu0 0.0
    %628 = vmatprep.subr.mxu0 0.0
    %629 = vmatpush1.msra.mxu0 0.0
    %630 = vmatprep.subr.mxu0 0.0
    %631 = vmatpush1.msra.mxu0 0.0
    %632 = vmatprep.subr.mxu0 0.0
    %633 = vmatpush1.msra.mxu0 0.0
    %634 = vmatprep.subr.mxu0 0.0
    %635 = vmatpush1.msra.mxu0 0.0
    %636 = vmatprep.subr.mxu0 0.0
    %637 = vmatpush1.msra.mxu0 0.0
    %638 = vmatprep.subr.mxu0 0.0
    %639 = vmatpush1.msra.mxu0 0.0
    %640 = vmatprep.subr.mxu0 0.0
    %641 = vmatpush1.msra.mxu0 0.0
    %642 = vmatprep.subr.mxu0 0.0
    %643 = vmatpush1.msra.mxu0 0.0
    %644 = vmatprep.subr.mxu0 0.0
    %645 = vmatpush1.msra.mxu0 0.0
    %646 = vmatprep.subr.mxu0 0.0
    %647 = vmatpush1.msra.mxu0 0.0
    %648 = vmatprep.subr.mxu0 0.0
    %649 = vmatpush1.msra.mxu0 0.0
    %650 = vmatprep.subr.mxu0 0.0
    %651 = vmatpush1.msra.mxu0 0.0
    %652 = vmatprep.subr.mxu0 0.0
    %653 = vmatpush1.msra.mxu0 0.0
    %654 = vmatprep.subr.mxu0 0.0
    %655 = vmatpush1.msra.mxu0 0.0
    %656 = vmatprep.subr.mxu0 0.0
    %657 = vmatpush1.msra.mxu0 0.0
    %658 = vmatprep.subr.mxu0 0.0
    %659 = vmatpush1.msra.mxu0 0.0
    %660 = vmatprep.subr.mxu0 0.0
    %661 = vmatpush1.msra.mxu0 0.0
    %662 = vmatprep.subr.mxu0 0.0
    %663 = vmatpush1.msra.mxu0 0.0
    %664 = vmatprep.subr.mxu0 0.0
    %665 = vmatpush1.msra.mxu0 0.0
    %666 = vmatprep.subr.mxu0 0.0
    %667 = vmatpush1.msra.mxu0 0.0
    %668 = vmatprep.subr.mxu0 0.0
    %669 = vmatpush1.msra.mxu0 0.0
    %670 = vmatprep.subr.mxu0 0.0
    %671 = vmatpush1.msra.mxu0 0.0
    %672 = vmatprep.subr.mxu0 0.0
    %673 = vmatpush1.msra.mxu0 0.0
    %674 = vmatprep.mubr.f32.mxu0 0.0
    %675 = vmatmul.mubr.f32.gmra.mrb[0].mxu0 %v608
    %v676 = vpop.f32.mrb[0].mxu0
    %v677 = vadd.f32 0.0, %v676
    %v678 = vpop.f32.mrb[0].mxu0
    %679 = vdwg.mxu0
    %v680 = vadd.f32 %v606, %v677
    %v681 = vtanh.pop %v680
    %s682 = scalar_lea.vmem [#allocation4], 12
    %683 = vst.msk [vmem:[%s682] sm:$0x3] %vm208, %v681
    %s684 = scalar_lea.vmem [#allocation3], 14
    %v685 = vld [vmem:[%s684] sm:$0x3]
    %v687 = vsel %vm124, %v681, 0
    %689 = vmatprep.subr.mxu0 0.0
    %690 = vmatpush1.msra.mxu0 %v127
    %691 = vmatprep.subr.mxu0 0.0
    %692 = vmatpush1.msra.mxu0 %v128
    %693 = vmatprep.subr.mxu0 0.0
    %694 = vmatpush1.msra.mxu0 %v129
    %695 = vmatprep.subr.mxu0 0.0
    %696 = vmatpush1.msra.mxu0 %v130
    %697 = vmatprep.subr.mxu0 0.0
    %698 = vmatpush1.msra.mxu0 0.0
    %699 = vmatprep.subr.mxu0 0.0
    %700 = vmatpush1.msra.mxu0 0.0
    %701 = vmatprep.subr.mxu0 0.0
    %702 = vmatpush1.msra.mxu0 0.0
    %703 = vmatprep.subr.mxu0 0.0
    %704 = vmatpush1.msra.mxu0 0.0
    %705 = vmatprep.subr.mxu0 0.0
    %706 = vmatpush1.msra.mxu0 0.0
    %707 = vmatprep.subr.mxu0 0.0
    %708 = vmatpush1.msra.mxu0 0.0
    %709 = vmatprep.subr.mxu0 0.0
    %710 = vmatpush1.msra.mxu0 0.0
    %711 = vmatprep.subr.mxu0 0.0
    %712 = vmatpush1.msra.mxu0 0.0
    %713 = vmatprep.subr.mxu0 0.0
    %714 = vmatpush1.msra.mxu0 0.0
    %715 = vmatprep.subr.mxu0 0.0
    %716 = vmatpush1.msra.mxu0 0.0
    %717 = vmatprep.subr.mxu0 0.0
    %718 = vmatpush1.msra.mxu0 0.0
    %719 = vmatprep.subr.mxu0 0.0
    %720 = vmatpush1.msra.mxu0 0.0
    %721 = vmatprep.subr.mxu0 0.0
    %722 = vmatpush1.msra.mxu0 0.0
    %723 = vmatprep.subr.mxu0 0.0
    %724 = vmatpush1.msra.mxu0 0.0
    %725 = vmatprep.subr.mxu0 0.0
    %726 = vmatpush1.msra.mxu0 0.0
    %727 = vmatprep.subr.mxu0 0.0
    %728 = vmatpush1.msra.mxu0 0.0
    %729 = vmatprep.subr.mxu0 0.0
    %730 = vmatpush1.msra.mxu0 0.0
    %731 = vmatprep.subr.mxu0 0.0
    %732 = vmatpush1.msra.mxu0 0.0
    %733 = vmatprep.subr.mxu0 0.0
    %734 = vmatpush1.msra.mxu0 0.0
    %735 = vmatprep.subr.mxu0 0.0
    %736 = vmatpush1.msra.mxu0 0.0
    %737 = vmatprep.subr.mxu0 0.0
    %738 = vmatpush1.msra.mxu0 0.0
    %739 = vmatprep.subr.mxu0 0.0
    %740 = vmatpush1.msra.mxu0 0.0
    %741 = vmatprep.subr.mxu0 0.0
    %742 = vmatpush1.msra.mxu0 0.0
    %743 = vmatprep.subr.mxu0 0.0
    %744 = vmatpush1.msra.mxu0 0.0
    %745 = vmatprep.subr.mxu0 0.0
    %746 = vmatpush1.msra.mxu0 0.0
    %747 = vmatprep.subr.mxu0 0.0
    %748 = vmatpush1.msra.mxu0 0.0
    %749 = vmatprep.subr.mxu0 0.0
    %750 = vmatpush1.msra.mxu0 0.0
    %751 = vmatprep.subr.mxu0 0.0
    %752 = vmatpush1.msra.mxu0 0.0
    %753 = vmatprep.mubr.f32.mxu0 0.0
    %754 = vmatmul.mubr.f32.gmra.mrb[0].mxu0 %v687
    %v755 = vpop.f32.mrb[0].mxu0
    %v756 = vadd.f32 0.0, %v755
    %v757 = vpop.f32.mrb[0].mxu0
    %758 = vdwg.mxu0
    %v759 = vadd.f32 %v685, %v756
    %v760 = vtanh.pop %v759
    %s761 = scalar_lea.vmem [#allocation4], 14
    %762 = vst.msk [vmem:[%s761] sm:$0x3] %vm208, %v760
    %763 = vst.msk [vmem:[#allocation2] sm:$0x3] %vm208, %v760
    %v764 = vld [vmem:[#allocation4] sm:$0xff]
    %v765 = vld [vmem:[#allocation4 + $0x8] sm:$0xff]
    %v766 = vld [vmem:[%s4] sm:$0xff]
    %v767 = vld [vmem:[%s4 + $0x8] sm:$0xff]
    %v768 = vld [vmem:[%s4 + $0x10] sm:$0xff]
    %v769 = vld [vmem:[%s4 + $0x18] sm:$0xff]
    %v770 = vld [vmem:[%s5] sm:$0x1]
    %v772 = vlaneseq
    %v773 = vshrl.u32 %v772, 7
    %v774 = vsub.s32 0, %v773
    %v775 = vrot.slane %v770, %v774
    %v778 = vsel %vm124, %v764, 0
    %v781 = vsel %vm124, %v765, 0
    %783 = vmatprep.subr.mxu0 0.0
    %784 = vmatpush1.msra.mxu0 %v766
    %785 = vmatprep.subr.mxu0 0.0
    %786 = vmatpush1.msra.mxu0 %v767
    %787 = vmatprep.subr.mxu0 0.0
    %788 = vmatpush1.msra.mxu0 %v768
    %789 = vmatprep.subr.mxu0 0.0
    %790 = vmatpush1.msra.mxu0 %v769
    %791 = vmatprep.subr.mxu0 0.0
    %792 = vmatpush1.msra.mxu0 0.0
    %793 = vmatprep.subr.mxu0 0.0
    %794 = vmatpush1.msra.mxu0 0.0
    %795 = vmatprep.subr.mxu0 0.0
    %796 = vmatpush1.msra.mxu0 0.0
    %797 = vmatprep.subr.mxu0 0.0
    %798 = vmatpush1.msra.mxu0 0.0
    %799 = vmatprep.subr.mxu0 0.0
    %800 = vmatpush1.msra.mxu0 0.0
    %801 = vmatprep.subr.mxu0 0.0
    %802 = vmatpush1.msra.mxu0 0.0
    %803 = vmatprep.subr.mxu0 0.0
    %804 = vmatpush1.msra.mxu0 0.0
    %805 = vmatprep.subr.mxu0 0.0
    %806 = vmatpush1.msra.mxu0 0.0
    %807 = vmatprep.subr.mxu0 0.0
    %808 = vmatpush1.msra.mxu0 0.0
    %809 = vmatprep.subr.mxu0 0.0
    %810 = vmatpush1.msra.mxu0 0.0
    %811 = vmatprep.subr.mxu0 0.0
    %812 = vmatpush1.msra.mxu0 0.0
    %813 = vmatprep.subr.mxu0 0.0
    %814 = vmatpush1.msra.mxu0 0.0
    %815 = vmatprep.subr.mxu0 0.0
    %816 = vmatpush1.msra.mxu0 0.0
    %817 = vmatprep.subr.mxu0 0.0
    %818 = vmatpush1.msra.mxu0 0.0
    %819 = vmatprep.subr.mxu0 0.0
    %820 = vmatpush1.msra.mxu0 0.0
    %821 = vmatprep.subr.mxu0 0.0
    %822 = vmatpush1.msra.mxu0 0.0
    %823 = vmatprep.subr.mxu0 0.0
    %824 = vmatpush1.msra.mxu0 0.0
    %825 = vmatprep.subr.mxu0 0.0
    %826 = vmatpush1.msra.mxu0 0.0
    %827 = vmatprep.subr.mxu0 0.0
    %828 = vmatpush1.msra.mxu0 0.0
    %829 = vmatprep.subr.mxu0 0.0
    %830 = vmatpush1.msra.mxu0 0.0
    %831 = vmatprep.subr.mxu0 0.0
    %832 = vmatpush1.msra.mxu0 0.0
    %833 = vmatprep.subr.mxu0 0.0
    %834 = vmatpush1.msra.mxu0 0.0
    %835 = vmatprep.subr.mxu0 0.0
    %836 = vmatpush1.msra.mxu0 0.0
    %837 = vmatprep.subr.mxu0 0.0
    %838 = vmatpush1.msra.mxu0 0.0
    %839 = vmatprep.subr.mxu0 0.0
    %840 = vmatpush1.msra.mxu0 0.0
    %841 = vmatprep.subr.mxu0 0.0
    %842 = vmatpush1.msra.mxu0 0.0
    %843 = vmatprep.subr.mxu0 0.0
    %844 = vmatpush1.msra.mxu0 0.0
    %845 = vmatprep.subr.mxu0 0.0
    %846 = vmatpush1.msra.mxu0 0.0
    %847 = vmatprep.mubr.f32.mxu0 0.0
    %848 = vmatmul.mubr.f32.gmra.mrb[0].mxu0 %v778
    %v849 = vpop.f32.mrb[0].mxu0
    %v850 = vadd.f32 %v775, %v849
    %v851 = vpop.f32.mrb[0].mxu0
    %852 = vmatprep.mubr.f32.mxu0 0.0
    %853 = vmatmul.mubr.f32.gmra.mrb[0].mxu0 %v781
    %v854 = vpop.f32.mrb[0].mxu0
    %v855 = vadd.f32 %v775, %v854
    %v856 = vpop.f32.mrb[0].mxu0
    %857 = vdwg.mxu0
    %vm858 = vcmask 31744
    %859 = vst.msk [vmem:[%s6] sm:$0xff] %vm858, %v850
    %860 = vst.msk [vmem:[%s6 + $0x8] sm:$0xff] %vm858, %v855
    // Predicated region
    $region30: #{tpu_custom_call.1} parent=1 // pred_check
      _
    $region31: #{tpu_custom_call.1} parent=1 // pred_check_branch
      %862 = sbr.rel (0) target = $region33
    $region32: #{tpu_custom_call.1} parent=1 // pred_region
      _
    $region33: #{tpu_custom_call.1} parent=1 // pred_fallthru
      _
    // Predicated region
    $region34: #{tpu_custom_call.1} parent=1 // pred_check
      _
    $region35: #{tpu_custom_call.1} parent=1 // pred_check_branch
      %864 = sbr.rel (0) target = $region37
    $region36: #{tpu_custom_call.1} parent=1 // pred_region
      %s866 = ssub.s32 256, 256
      %867 = vsyncadd [#allocation5], %s866
      %s868 = sshll.u32 [#allocation4], 4
      %s869 = int_to_ptr.vmem [resolvable:$true] %s868
      %874 = dma.vmem_to_hbm [thread:$0]  %s869, 256, %s7, [#allocation5], 128, 128, 8
    $region37: #{tpu_custom_call.1} parent=1 // pred_fallthru
      _
    // Predicated region
    $region38: #{tpu_custom_call.1} parent=1 // pred_check
      _
    $region39: #{tpu_custom_call.1} parent=1 // pred_check_branch
      %876 = sbr.rel (0) target = $region41
    $region40: #{tpu_custom_call.1} parent=1 // pred_region
      _
    $region41: #{tpu_custom_call.1} parent=1 // pred_fallthru
      _
    // Predicated region
    $region42: #{tpu_custom_call.1} parent=1 // pred_check
      _
    $region43: #{tpu_custom_call.1} parent=1 // pred_check_branch
      %878 = sbr.rel (0) target = $region45
    $region44: #{tpu_custom_call.1} parent=1 // pred_region
      %879 = dma.done [#allocation5], 256
    $region45: #{tpu_custom_call.1} parent=1 // pred_fallthru
      _
    %880 = vsyncpa [#allocation5], 1

</llo_original>
